<compile_context>
chip_gen: v5e
topology: v5e:2x2
jax: 0.10.0
libtpu: 0.0.40
codegen_flags: <defaults>
</compile_context>

<pallas_src>
import jax
import jax.numpy as jnp
from jax import lax
from jax.experimental import pallas as pl
from jax.experimental.pallas import tpu as pltpu

HIDDEN = 32        # the module hard-codes 32 internal channels
COUT_PAD = 128     # lane-dense output channel padding


def _round_up(v, m):
    return -(-v // m) * m


def _biconvglu_kernel(xc_ref, wt_ref, blr_ref, wg_ref, bg_ref, w2_ref, b2_ref,
                      o_ref):
    f32 = jnp.float32
    # Fused conv1 + l/r tap convs: one im2col GEMM -> [left || right] (64 lanes).
    lr = jnp.dot(xc_ref[...], wt_ref[...], preferred_element_type=f32) + blr_ref[...]
    # Fused 1x1 gate convs (cross block-diagonal weight) -> [rmask || lmask].
    mask = jax.nn.sigmoid(
        jnp.dot(lr.astype(jnp.bfloat16), wg_ref[...], preferred_element_type=f32)
        + bg_ref[...])
    gp = lr * mask                                   # [left*rmask || right*lmask]
    # conv2 with w2 stacked twice along K folds the GLU add into the GEMM; the
    # output channel dim is padded to 128 lanes for unmasked full-width stores.
    o_ref[...] = (jnp.dot(gp.astype(jnp.bfloat16), w2_ref[...],
                          preferred_element_type=f32)
                  + b2_ref[...]).astype(o_ref.dtype)


def _vmem_limit_bytes(tile_bytes):
    # Generation-aware VMEM budget: double-buffered tiles + headroom, clamped to
    # ~3/4 of physical VMEM (64 MiB on v7x, 128 MiB on v5e/v6e).
    try:
        cap = pltpu.get_tpu_info().vmem_capacity_bytes
    except Exception:
        cap = 64 * 1024 * 1024
    want = 4 * tile_bytes + (8 << 20)
    return int(max(16 << 20, min(want, (cap * 3) // 4)))


def biconvglu_pallas(x, packed, *, stride, pixel_tile=1024):
    meta = packed["meta"]
    cin, cout = meta["cin"], meta["cout"]
    kh, kw, k_pad = meta["kh"], meta["kw"], meta["k_pad"]
    sh, sw = stride
    N, Cx, H, W = x.shape
    assert Cx == cin and H >= kh and W >= kw
    Ho = (H - kh) // sh + 1
    Wo = (W - kw) // sw + 1
    P = Ho * Wo
    K = kh * kw * cin

    # ---- wrapper: layout plumbing only. im2col over the *kept* strided output
    # positions (pixel-major rows; taps*channels on lanes). The conv halo is
    # baked in here, so kernel pixel tiles are fully independent.
    xn = jnp.transpose(x, (0, 2, 3, 1))                        # NHWC
    cols = []
    for dh in range(kh):
        for dw in range(kw):
            cols.append(xn[:, dh:dh + (Ho - 1) * sh + 1:sh,
                           dw:dw + (Wo - 1) * sw + 1:sw, :])
    x_col = jnp.concatenate(cols, axis=-1).reshape(N, P, K)

    TP = min(pixel_tile, _round_up(P, 8))                      # pixel-tile rows
    P_pad = _round_up(P, TP)
    x_col = jnp.pad(x_col, ((0, 0), (0, P_pad - P), (0, k_pad - K)))
    x_col = x_col.astype(jnp.bfloat16)

    weights = [packed[k] for k in ("w_taps", "b_lr", "w_gate", "b_gate", "w2s", "b2")]
    w_bytes = sum(int(w.size) * w.dtype.itemsize for w in weights)
    tile_bytes = TP * k_pad * 2 + TP * COUT_PAD * 4 + w_bytes

    flops_row = (2 * k_pad * 2 * HIDDEN            # im2col tap GEMM
                 + 2 * (2 * HIDDEN) ** 2           # fused gate GEMM
                 + 2 * 2 * HIDDEN * COUT_PAD)      # fused conv2 GEMM
    cost = pl.CostEstimate(
        flops=int(N * P_pad * flops_row),
        transcendentals=int(N * P_pad * 2 * HIDDEN),
        bytes_accessed=int(x_col.size * 2 + w_bytes + N * P_pad * COUT_PAD * 4))

    def _wspec(a):
        return pl.BlockSpec(a.shape, lambda n, p: (0,) * a.ndim)

    out_full = pl.pallas_call(
        _biconvglu_kernel,
        out_shape=jax.ShapeDtypeStruct((N, P_pad, COUT_PAD), jnp.float32),
        grid_spec=pltpu.PrefetchScalarGridSpec(
            num_scalar_prefetch=0,
            grid=(N, P_pad // TP),
            in_specs=[pl.BlockSpec((pl.Squeezed(), TP, k_pad),
                                   lambda n, p: (n, p, 0))]
                     + [_wspec(w) for w in weights],
            out_specs=pl.BlockSpec((pl.Squeezed(), TP, COUT_PAD),
                                   lambda n, p: (n, p, 0)),
        ),
        compiler_params=pltpu.CompilerParams(
            dimension_semantics=("parallel", "parallel"),
            vmem_limit_bytes=_vmem_limit_bytes(tile_bytes),
        ),
        cost_estimate=cost,
    )(x_col, *weights)

    # Drop lane/row padding, back to NCHW.
    out = out_full[:, :P, :cout].reshape(N, Ho, Wo, cout)
    return jnp.transpose(out, (0, 3, 1, 2)).astype(x.dtype)


# ----------------------- parameters & pure-JAX reference -----------------------

def init_raw_params(key, in_channels, out_channels, kernel_size):
    """PyTorch-layout (OIHW) weights with Conv2d-style uniform init."""
    kh, kw = kernel_size

    def conv_init(k, co, ci, kh_, kw_):
        kw_key, kb_key = jax.random.split(k)
        bound = 1.0 / float(ci * kh_ * kw_) ** 0.5
        w = jax.random.uniform(kw_key, (co, ci, kh_, kw_), jnp.float32, -bound, bound)
        b = jax.random.uniform(kb_key, (co,), jnp.float32, -bound, bound)
        return w, b

    keys = jax.random.split(key, 6)
    raw = {}
    raw["conv1_w"], raw["conv1_b"] = conv_init(keys[0], HIDDEN, in_channels, 1, 1)
    raw["l_w"], raw["l_b"] = conv_init(keys[1], HIDDEN, HIDDEN, kh, kw)
    raw["lc_w"], raw["lc_b"] = conv_init(keys[2], HIDDEN, HIDDEN, 1, 1)
    raw["r_w"], raw["r_b"] = conv_init(keys[3], HIDDEN, HIDDEN, kh, kw)
    raw["rc_w"], raw["rc_b"] = conv_init(keys[4], HIDDEN, HIDDEN, 1, 1)
    raw["conv2_w"], raw["conv2_b"] = conv_init(keys[5], out_channels, HIDDEN, 1, 1)
    return raw


def pack_params(raw):
    """Repack PyTorch OIHW weights into the fused GEMM layouts the kernel uses."""
    co1, cin = raw["conv1_w"].shape[:2]
    assert co1 == HIDDEN
    kh, kw = raw["l_w"].shape[2], raw["l_w"].shape[3]
    cout = raw["conv2_w"].shape[0]

    w1 = jnp.transpose(raw["conv1_w"].reshape(HIDDEN, cin), (1, 0))      # (Cin, 32)
    wl = jnp.transpose(raw["l_w"], (2, 3, 1, 0))                         # (kh,kw,in,out)
    wr = jnp.transpose(raw["r_w"], (2, 3, 1, 0))

    # Compose conv1 into the tap weights (exact algebraic rewrite; Cin < 32 here).
    wl_c = jnp.einsum("ci,hwio->hwco", w1, wl).reshape(kh * kw * cin, HIDDEN)
    wr_c = jnp.einsum("ci,hwio->hwco", w1, wr).reshape(kh * kw * cin, HIDDEN)
    w_taps = jnp.concatenate([wl_c, wr_c], axis=-1)                      # (K, 64)
    K = kh * kw * cin
    k_pad = _round_up(K, 8)
    w_taps = jnp.pad(w_taps, ((0, k_pad - K), (0, 0)))

    bl = raw["l_b"] + raw["conv1_b"] @ wl.sum(axis=(0, 1))               # (32,)
    br = raw["r_b"] + raw["conv1_b"] @ wr.sum(axis=(0, 1))
    b_lr = jnp.concatenate([bl, br]).reshape(1, 2 * HIDDEN)

    wlg = jnp.transpose(raw["lc_w"].reshape(HIDDEN, HIDDEN), (1, 0))
    wrg = jnp.transpose(raw["rc_w"].reshape(HIDDEN, HIDDEN), (1, 0))
    w_gate = jnp.zeros((2 * HIDDEN, 2 * HIDDEN), jnp.float32)
    w_gate = w_gate.at[HIDDEN:, :HIDDEN].set(wrg)    # right -> rmask (cols 0:32)
    w_gate = w_gate.at[:HIDDEN, HIDDEN:].set(wlg)    # left  -> lmask (cols 32:64)
    b_gate = jnp.concatenate([raw["rc_b"], raw["lc_b"]]).reshape(1, 2 * HIDDEN)

    w2 = jnp.transpose(raw["conv2_w"].reshape(cout, HIDDEN), (1, 0))     # (32, Cout)
    w2 = jnp.pad(w2, ((0, 0), (0, COUT_PAD - cout)))                     # lane-dense
    w2s = jnp.concatenate([w2, w2], axis=0)                              # (64, 128)
    b2 = jnp.pad(raw["conv2_b"], (0, COUT_PAD - cout)).reshape(1, COUT_PAD)

    return dict(
        w_taps=w_taps.astype(jnp.bfloat16),
        b_lr=b_lr.astype(jnp.float32),
        w_gate=w_gate.astype(jnp.bfloat16),
        b_gate=b_gate.astype(jnp.float32),
        w2s=w2s.astype(jnp.bfloat16),
        b2=b2.astype(jnp.float32),
        meta=dict(cin=int(cin), cout=int(cout), kh=int(kh), kw=int(kw),
                  k_pad=int(k_pad)),
    )


def _conv_nchw(x, w, b, stride=(1, 1)):
    y = lax.conv_general_dilated(x, w, window_strides=stride, padding="VALID",
                                 dimension_numbers=("NCHW", "OIHW", "NCHW"))
    return y + b.reshape(1, -1, 1, 1)


def biconvglu_reference(x, raw, *, stride):
    h = _conv_nchw(x, raw["conv1_w"], raw["conv1_b"])
    left = _conv_nchw(h, raw["l_w"], raw["l_b"], stride)
    right = _conv_nchw(h, raw["r_w"], raw["r_b"], stride)
    lmask = jax.nn.sigmoid(_conv_nchw(left, raw["lc_w"], raw["lc_b"]))
    rmask = jax.nn.sigmoid(_conv_nchw(right, raw["rc_w"], raw["rc_b"]))
    g = left * rmask + right * lmask
    return _conv_nchw(g, raw["conv2_w"], raw["conv2_b"])


if __name__ == "__main__":
    key = jax.random.PRNGKey(0)
    N, Cin, H, W = 2, 4, 16, 16
    Cout = 8
    kernel_size = (3, 3)

    kx, kp = jax.random.split(key)
    x = jax.random.normal(kx, (N, Cin, H, W), dtype=jnp.float32)
    raw = init_raw_params(kp, Cin, Cout, kernel_size)
    packed = pack_params(raw)

    # Tolerance sized for bf16 MXU operands (f32 accumulation).
    for stride in ((1, 1), (2, 2)):
        out = jax.block_until_ready(biconvglu_pallas(x, packed, stride=stride))
        ref = biconvglu_reference(x, raw, stride=stride)
        assert out.shape == ref.shape, (out.shape, ref.shape)
        max_err = float(jnp.max(jnp.abs(out - ref)))
        assert max_err < 2e-2, f"stride={stride}: max abs err {max_err}"

    print("KERNEL_OK")
</pallas_src>

<mosaic_0001>
module attributes {stable_mosaic.version = 11 : i64} {
  func.func @_biconvglu_kernel(%arg0: i32, %arg1: i32, %arg2: memref<1x200x40xbf16, #tpu.memory_space<vmem>>, %arg3: memref<40x64xbf16, #tpu.memory_space<vmem>>, %arg4: memref<1x64xf32, #tpu.memory_space<vmem>>, %arg5: memref<64x64xbf16, #tpu.memory_space<vmem>>, %arg6: memref<1x64xf32, #tpu.memory_space<vmem>>, %arg7: memref<64x128xbf16, #tpu.memory_space<vmem>>, %arg8: memref<1x128xf32, #tpu.memory_space<vmem>>, %arg9: memref<1x200x128xf32, #tpu.memory_space<vmem>>) attributes {dimension_semantics = [#tpu.dimension_semantics<parallel>, #tpu.dimension_semantics<parallel>], iteration_bounds = array<i64: 2, 1>, scalar_prefetch = 0 : i64, scratch_operands = 0 : i64, tpu.core_type = #tpu.core_type<tc>, window_params = [{transform_indices = @transform_0, window_bounds = array<i64: 1, 200, 40>}, {pipeline_mode = #tpu.pipeline_mode<synchronous>, transform_indices = @transform_1, window_bounds = array<i64: 40, 64>}, {pipeline_mode = #tpu.pipeline_mode<synchronous>, transform_indices = @transform_2, window_bounds = array<i64: 1, 64>}, {pipeline_mode = #tpu.pipeline_mode<synchronous>, transform_indices = @transform_3, window_bounds = array<i64: 64, 64>}, {pipeline_mode = #tpu.pipeline_mode<synchronous>, transform_indices = @transform_4, window_bounds = array<i64: 1, 64>}, {pipeline_mode = #tpu.pipeline_mode<synchronous>, transform_indices = @transform_5, window_bounds = array<i64: 64, 128>}, {pipeline_mode = #tpu.pipeline_mode<synchronous>, transform_indices = @transform_6, window_bounds = array<i64: 1, 128>}, {transform_indices = @transform_7, window_bounds = array<i64: 1, 200, 128>}]} {
    %c0 = arith.constant 0 : index
    %c0_0 = arith.constant 0 : index
    %c0_1 = arith.constant 0 : index
    %0 = vector.load %arg2[%c0, %c0_0, %c0_1] : memref<1x200x40xbf16, #tpu.memory_space<vmem>>, vector<1x200x40xbf16>
    %1 = vector.shape_cast %0 : vector<1x200x40xbf16> to vector<200x40xbf16>
    %c0_2 = arith.constant 0 : index
    %c0_3 = arith.constant 0 : index
    %2 = vector.load %arg3[%c0_2, %c0_3] : memref<40x64xbf16, #tpu.memory_space<vmem>>, vector<40x64xbf16>
    %cst = arith.constant dense<0.000000e+00> : vector<200x64xf32>
    %3 = tpu.matmul %1, %2, %cst {dimension_numbers = #tpu.dot_dimension_numbers<[1], [0], [0], [1], [0, 0, 1, 1], [], []>} : vector<200x40xbf16>, vector<40x64xbf16>, vector<200x64xf32> -> vector<200x64xf32>
    %c0_4 = arith.constant 0 : index
    %c0_5 = arith.constant 0 : index
    %4 = vector.load %arg4[%c0_4, %c0_5] : memref<1x64xf32, #tpu.memory_space<vmem>>, vector<1x64xf32>
    %5 = vector.broadcast %4 : vector<1x64xf32> to vector<200x64xf32>
    %6 = arith.addf %3, %5 : vector<200x64xf32>
    %7 = arith.truncf %6 : vector<200x64xf32> to vector<200x64xbf16>
    %c0_6 = arith.constant 0 : index
    %c0_7 = arith.constant 0 : index
    %8 = vector.load %arg5[%c0_6, %c0_7] : memref<64x64xbf16, #tpu.memory_space<vmem>>, vector<64x64xbf16>
    %cst_8 = arith.constant dense<0.000000e+00> : vector<200x64xf32>
    %9 = tpu.matmul %7, %8, %cst_8 {dimension_numbers = #tpu.dot_dimension_numbers<[1], [0], [0], [1], [0, 0, 1, 1], [], []>} : vector<200x64xbf16>, vector<64x64xbf16>, vector<200x64xf32> -> vector<200x64xf32>
    %c0_9 = arith.constant 0 : index
    %c0_10 = arith.constant 0 : index
    %10 = vector.load %arg6[%c0_9, %c0_10] : memref<1x64xf32, #tpu.memory_space<vmem>>, vector<1x64xf32>
    %11 = vector.broadcast %10 : vector<1x64xf32> to vector<200x64xf32>
    %12 = arith.addf %9, %11 : vector<200x64xf32>
    %13 = arith.negf %12 : vector<200x64xf32>
    %14 = math.exp %13 : vector<200x64xf32>
    %cst_11 = arith.constant 1.000000e+00 : f32
    %15 = vector.broadcast %cst_11 : f32 to vector<200x64xf32>
    %16 = arith.addf %15, %14 : vector<200x64xf32>
    %17 = arith.divf %15, %16 : vector<200x64xf32>
    %18 = arith.mulf %6, %17 : vector<200x64xf32>
    %19 = arith.truncf %18 : vector<200x64xf32> to vector<200x64xbf16>
    %c0_12 = arith.constant 0 : index
    %c0_13 = arith.constant 0 : index
    %20 = vector.load %arg7[%c0_12, %c0_13] : memref<64x128xbf16, #tpu.memory_space<vmem>>, vector<64x128xbf16>
    %cst_14 = arith.constant dense<0.000000e+00> : vector<200x128xf32>
    %21 = tpu.matmul %19, %20, %cst_14 {dimension_numbers = #tpu.dot_dimension_numbers<[1], [0], [0], [1], [0, 0, 1, 1], [], []>} : vector<200x64xbf16>, vector<64x128xbf16>, vector<200x128xf32> -> vector<200x128xf32>
    %c0_15 = arith.constant 0 : index
    %c0_16 = arith.constant 0 : index
    %22 = vector.load %arg8[%c0_15, %c0_16] : memref<1x128xf32, #tpu.memory_space<vmem>>, vector<1x128xf32>
    %23 = vector.broadcast %22 : vector<1x128xf32> to vector<200x128xf32>
    %24 = arith.addf %21, %23 : vector<200x128xf32>
    %c0_17 = arith.constant 0 : index
    %c0_18 = arith.constant 0 : index
    %c0_19 = arith.constant 0 : index
    %25 = vector.load %arg9[%c0_17, %c0_18, %c0_19] : memref<1x200x128xf32, #tpu.memory_space<vmem>>, vector<1x200x128xf32>
    %26 = vector.shape_cast %25 : vector<1x200x128xf32> to vector<200x128xf32>
    %27 = vector.shape_cast %24 : vector<200x128xf32> to vector<1x200x128xf32>
    tpu.vector_store %arg9[%c0_17, %c0_18, %c0_19], %27 {strides = array<i32>} : memref<1x200x128xf32, #tpu.memory_space<vmem>>, vector<1x200x128xf32>,
    return
  }
  func.func @transform_0(%arg0: i32, %arg1: i32) -> (i32, i32, i32) {
    %c0_i32 = arith.constant 0 : i32
    %c0_i32_0 = arith.constant 0 : i32
    return %arg0, %arg1, %c0_i32 : i32, i32, i32
  }
  func.func @transform_1(%arg0: i32, %arg1: i32) -> (i32, i32) {
    %c0_i32 = arith.constant 0 : i32
    %c0_i32_0 = arith.constant 0 : i32
    %c0_i32_1 = arith.constant 0 : i32
    return %c0_i32, %c0_i32_0 : i32, i32
  }
  func.func @transform_2(%arg0: i32, %arg1: i32) -> (i32, i32) {
    %c0_i32 = arith.constant 0 : i32
    %c0_i32_0 = arith.constant 0 : i32
    %c0_i32_1 = arith.constant 0 : i32
    return %c0_i32, %c0_i32_0 : i32, i32
  }
  func.func @transform_3(%arg0: i32, %arg1: i32) -> (i32, i32) {
    %c0_i32 = arith.constant 0 : i32
    %c0_i32_0 = arith.constant 0 : i32
    %c0_i32_1 = arith.constant 0 : i32
    return %c0_i32, %c0_i32_0 : i32, i32
  }
  func.func @transform_4(%arg0: i32, %arg1: i32) -> (i32, i32) {
    %c0_i32 = arith.constant 0 : i32
    %c0_i32_0 = arith.constant 0 : i32
    %c0_i32_1 = arith.constant 0 : i32
    return %c0_i32, %c0_i32_0 : i32, i32
  }
  func.func @transform_5(%arg0: i32, %arg1: i32) -> (i32, i32) {
    %c0_i32 = arith.constant 0 : i32
    %c0_i32_0 = arith.constant 0 : i32
    %c0_i32_1 = arith.constant 0 : i32
    return %c0_i32, %c0_i32_0 : i32, i32
  }
  func.func @transform_6(%arg0: i32, %arg1: i32) -> (i32, i32) {
    %c0_i32 = arith.constant 0 : i32
    %c0_i32_0 = arith.constant 0 : i32
    %c0_i32_1 = arith.constant 0 : i32
    return %c0_i32, %c0_i32_0 : i32, i32
  }
  func.func @transform_7(%arg0: i32, %arg1: i32) -> (i32, i32, i32) {
    %c0_i32 = arith.constant 0 : i32
    %c0_i32_0 = arith.constant 0 : i32
    return %arg0, %arg1, %c0_i32 : i32, i32, i32
  }
}

</mosaic_0001>

<llo_original>
// kernel: tpu_custom_call.1
$region0: #{tpu_custom_call.1}
  #allocation0 [shape = 'u32[]', space=smem, size = 0x4, offset = 0x4, fixed_abs, tag = 'smem constant byte address 0x4 - core index']
  #allocation1 [shape = 'u32[72,128]{1,0:T(1,128)}', space=vmem, size = 0x9000, scoped, tag = 'internal scratch']
  %s0 = inlined_call_operand.vmem [shape: bf16[2,200,40], index: 0, kind: input, shape index: {}]
  %s1 = inlined_call_operand.vmem [shape: bf16[40,64], index: 1, kind: input, shape index: {}]
  %s2 = inlined_call_operand.vmem [shape: f32[1,64], index: 2, kind: input, shape index: {}]
  %s3 = inlined_call_operand.vmem [shape: bf16[64,64], index: 3, kind: input, shape index: {}]
  %s4 = inlined_call_operand.vmem [shape: f32[1,64], index: 4, kind: input, shape index: {}]
  %s5 = inlined_call_operand.vmem [shape: bf16[64,128], index: 5, kind: input, shape index: {}]
  %s6 = inlined_call_operand.vmem [shape: f32[1,128], index: 6, kind: input, shape index: {}]
  %s7 = inlined_call_operand.hbm [shape: f32[2,200,128], index: 7, kind: output, shape index: {}]
  %s8 = sld [smem:[#allocation0]]
  $region61: #{tpu_custom_call.1} parent=0
    _
  %s10 = ssub.s32 1, %s8
  %s11 = scalar_select 0, %s10, %s8
  $region1: #{tpu_custom_call.1} parent=0
    #allocation2 [shape = 'u8[204800]{0}', space=vmem, size = 0x32000, scoped, tag = 'output window, operand 0']
    #allocation3 [shape = 's32[2]{0}', space=sflag, size = 0x8, scoped, tag = 'scoped memory for tpu_custom_call.1']
    %12 = vsyncpa [#allocation3], 0
    %s13 = scalar_lea.sflag [#allocation3], 1
    %14 = vsyncpa %s13, 0
    loop: start=0, step=1, limit=4
    $region2: #{tpu_custom_call.1} parent=1 // loop_pre_header
      _
    $region3: #{tpu_custom_call.1} parent=1 // loop_header
      %s16 = sphi 0, %s20
      %p17 = scmp.ge.s32.totalorder %s16, 4
      %s23 = sphi 0, %s35
      %s24 = sphi 0, %s31
      %s25 = sphi 0, %s23
      %s26 = sphi 0, %s24
      %s27 = sphi 0, %s25
      %s28 = sphi 0, %s26
      %s40 = sphi 0, %s42
      %s43 = sphi 0, %s40
      %s44 = sphi 0, %s43
      %s60 = sphi 0, %s44
      %s64 = sphi 0, %s64
      %s66 = sphi 0, %s64
      %s67 = sphi 0, %s66
      %s81 = sphi 0, %s67
      %s85 = sphi 0, %s85
      %s87 = sphi 0, %s85
      %s88 = sphi 0, %s87
      %s102 = sphi 0, %s88
      %s106 = sphi 0, %s106
      %s108 = sphi 0, %s106
      %s109 = sphi 0, %s108
      %s123 = sphi 0, %s109
      %s127 = sphi 0, %s127
      %s129 = sphi 0, %s127
      %s130 = sphi 0, %s129
      %s144 = sphi 0, %s130
      %s148 = sphi 0, %s148
      %s150 = sphi 0, %s148
      %s151 = sphi 0, %s150
      %s165 = sphi 0, %s151
      %s169 = sphi 0, %s169
      %s171 = sphi 0, %s169
      %s172 = sphi 0, %s171
      %s186 = sphi 0, %s172
      %s194 = sphi 0, %s196
      %s197 = sphi 0, %s194
      %s198 = sphi 0, %s197
      %s214 = sphi 0, %s198
    $region4: #{tpu_custom_call.1} parent=1 // loop_header_branch
      %19 = sbr.rel (%p17) target = $region8
    $region5: #{tpu_custom_call.1} parent=1 // loop_body
      %s21 = ssub.s32 %s16, 1
      %s22 = ssub.s32 %s16, 2
      %s29 = sadd.s32 1, %s24
      %p30 = scmp.ge.s32.totalorder %s29, 1
      %s31 = scalar_select %p30, 0, %s29
      %s32 = sadd.s32 1, %s23
      %s33 = scalar_select %p30, %s32, %s23
      %p34 = scmp.ge.s32.totalorder %s33, 2
      %s35 = scalar_select %p34, 0, %s33
      %s36 = ssub.s32 %s23, %s35
      %s37 = ssub.s32 %s24, %s31
      %s38 = sor.u32 %s36, %s37
      %p39 = scmp.eq.s32.totalorder %s38, 0
      %s41 = sadd.s32 %s40, 1
      %s42 = scalar_select %p39, %s40, %s41
      %p45 = pneg %p39
      %p46 = scmp.eq.s32.totalorder %s16, 1
      %p47 = por %p45, %p46
      %p48 = scmp.ne.s32.totalorder %s40, %s43
      %p49 = scmp.eq.s32.totalorder %s16, 0
      %p50 = por %p48, %p49
      %p51 = scmp.ne.s32.totalorder %s40, %s43
      %p52 = scmp.eq.s32.totalorder %s21, 1
      %p53 = por %p51, %p52
      %p54 = scmp.ne.s32.totalorder %s43, %s44
      %p55 = scmp.eq.s32.totalorder %s21, 0
      %p56 = por %p54, %p55
      %p57 = scmp.ne.s32.totalorder %s43, %s44
      %p58 = scmp.eq.s32.totalorder %s22, 1
      %p59 = por %p57, %p58
      %p61 = scmp.ne.s32.totalorder %s44, %s60
      %p62 = scmp.eq.s32.totalorder %s22, 0
      %p63 = por %p61, %p62
      %s65 = sadd.s32 %s64, 1
      %p68 = scmp.eq.s32.totalorder %s16, 1
      %p69 = scmp.ne.s32.totalorder %s64, %s66
      %p70 = scmp.eq.s32.totalorder %s16, 0
      %p71 = por %p69, %p70
      %p72 = scmp.ne.s32.totalorder %s64, %s66
      %p73 = scmp.eq.s32.totalorder %s21, 1
      %p74 = por %p72, %p73
      %p75 = scmp.ne.s32.totalorder %s66, %s67
      %p76 = scmp.eq.s32.totalorder %s21, 0
      %p77 = por %p75, %p76
      %p78 = scmp.ne.s32.totalorder %s66, %s67
      %p79 = scmp.eq.s32.totalorder %s22, 1
      %p80 = por %p78, %p79
      %p82 = scmp.ne.s32.totalorder %s67, %s81
      %p83 = scmp.eq.s32.totalorder %s22, 0
      %p84 = por %p82, %p83
      %s86 = sadd.s32 %s85, 1
      %p89 = scmp.eq.s32.totalorder %s16, 1
      %p90 = scmp.ne.s32.totalorder %s85, %s87
      %p91 = scmp.eq.s32.totalorder %s16, 0
      %p92 = por %p90, %p91
      %p93 = scmp.ne.s32.totalorder %s85, %s87
      %p94 = scmp.eq.s32.totalorder %s21, 1
      %p95 = por %p93, %p94
      %p96 = scmp.ne.s32.totalorder %s87, %s88
      %p97 = scmp.eq.s32.totalorder %s21, 0
      %p98 = por %p96, %p97
      %p99 = scmp.ne.s32.totalorder %s87, %s88
      %p100 = scmp.eq.s32.totalorder %s22, 1
      %p101 = por %p99, %p100
      %p103 = scmp.ne.s32.totalorder %s88, %s102
      %p104 = scmp.eq.s32.totalorder %s22, 0
      %p105 = por %p103, %p104
      %s107 = sadd.s32 %s106, 1
      %p110 = scmp.eq.s32.totalorder %s16, 1
      %p111 = scmp.ne.s32.totalorder %s106, %s108
      %p112 = scmp.eq.s32.totalorder %s16, 0
      %p113 = por %p111, %p112
      %p114 = scmp.ne.s32.totalorder %s106, %s108
      %p115 = scmp.eq.s32.totalorder %s21, 1
      %p116 = por %p114, %p115
      %p117 = scmp.ne.s32.totalorder %s108, %s109
      %p118 = scmp.eq.s32.totalorder %s21, 0
      %p119 = por %p117, %p118
      %p120 = scmp.ne.s32.totalorder %s108, %s109
      %p121 = scmp.eq.s32.totalorder %s22, 1
      %p122 = por %p120, %p121
      %p124 = scmp.ne.s32.totalorder %s109, %s123
      %p125 = scmp.eq.s32.totalorder %s22, 0
      %p126 = por %p124, %p125
      %s128 = sadd.s32 %s127, 1
      %p131 = scmp.eq.s32.totalorder %s16, 1
      %p132 = scmp.ne.s32.totalorder %s127, %s129
      %p133 = scmp.eq.s32.totalorder %s16, 0
      %p134 = por %p132, %p133
      %p135 = scmp.ne.s32.totalorder %s127, %s129
      %p136 = scmp.eq.s32.totalorder %s21, 1
      %p137 = por %p135, %p136
      %p138 = scmp.ne.s32.totalorder %s129, %s130
      %p139 = scmp.eq.s32.totalorder %s21, 0
      %p140 = por %p138, %p139
      %p141 = scmp.ne.s32.totalorder %s129, %s130
      %p142 = scmp.eq.s32.totalorder %s22, 1
      %p143 = por %p141, %p142
      %p145 = scmp.ne.s32.totalorder %s130, %s144
      %p146 = scmp.eq.s32.totalorder %s22, 0
      %p147 = por %p145, %p146
      %s149 = sadd.s32 %s148, 1
      %p152 = scmp.eq.s32.totalorder %s16, 1
      %p153 = scmp.ne.s32.totalorder %s148, %s150
      %p154 = scmp.eq.s32.totalorder %s16, 0
      %p155 = por %p153, %p154
      %p156 = scmp.ne.s32.totalorder %s148, %s150
      %p157 = scmp.eq.s32.totalorder %s21, 1
      %p158 = por %p156, %p157
      %p159 = scmp.ne.s32.totalorder %s150, %s151
      %p160 = scmp.eq.s32.totalorder %s21, 0
      %p161 = por %p159, %p160
      %p162 = scmp.ne.s32.totalorder %s150, %s151
      %p163 = scmp.eq.s32.totalorder %s22, 1
      %p164 = por %p162, %p163
      %p166 = scmp.ne.s32.totalorder %s151, %s165
      %p167 = scmp.eq.s32.totalorder %s22, 0
      %p168 = por %p166, %p167
      %s170 = sadd.s32 %s169, 1
      %p173 = scmp.eq.s32.totalorder %s16, 1
      %p174 = scmp.ne.s32.totalorder %s169, %s171
      %p175 = scmp.eq.s32.totalorder %s16, 0
      %p176 = por %p174, %p175
      %p177 = scmp.ne.s32.totalorder %s169, %s171
      %p178 = scmp.eq.s32.totalorder %s21, 1
      %p179 = por %p177, %p178
      %p180 = scmp.ne.s32.totalorder %s171, %s172
      %p181 = scmp.eq.s32.totalorder %s21, 0
      %p182 = por %p180, %p181
      %p183 = scmp.ne.s32.totalorder %s171, %s172
      %p184 = scmp.eq.s32.totalorder %s22, 1
      %p185 = por %p183, %p184
      %p187 = scmp.ne.s32.totalorder %s172, %s186
      %p188 = scmp.eq.s32.totalorder %s22, 0
      %p189 = por %p187, %p188
      %s190 = ssub.s32 %s23, %s35
      %s191 = ssub.s32 %s24, %s31
      %s192 = sor.u32 %s190, %s191
      %p193 = scmp.eq.s32.totalorder %s192, 0
      %s195 = sadd.s32 %s194, 1
      %s196 = scalar_select %p193, %s194, %s195
      %p199 = pneg %p193
      %p200 = scmp.eq.s32.totalorder %s16, 1
      %p201 = por %p199, %p200
      %p202 = scmp.ne.s32.totalorder %s194, %s197
      %p203 = scmp.eq.s32.totalorder %s16, 0
      %p204 = por %p202, %p203
      %p205 = scmp.ne.s32.totalorder %s194, %s197
      %p206 = scmp.eq.s32.totalorder %s21, 1
      %p207 = por %p205, %p206
      %p208 = scmp.ne.s32.totalorder %s197, %s198
      %p209 = scmp.eq.s32.totalorder %s21, 0
      %p210 = por %p208, %p209
      %p211 = scmp.ne.s32.totalorder %s197, %s198
      %p212 = scmp.eq.s32.totalorder %s22, 1
      %p213 = por %p211, %p212
      %p215 = scmp.ne.s32.totalorder %s198, %s214
      %p216 = scmp.eq.s32.totalorder %s22, 0
      %p217 = por %p215, %p216
      %p218 = scmp.le.s32.totalorder 1, %s16
      %p219 = scmp.lt.s32.totalorder %s16, 3
      %p220 = pnand %p218, %p219
      %p221 = pneg %p220
      // Predicated region
      $region9: #{tpu_custom_call.1} parent=5 // pred_check
        _
      $region10: #{tpu_custom_call.1} parent=5 // pred_check_branch
        %223 = sbr.rel (%p220) target = $region12
      $region11: #{tpu_custom_call.1} parent=5 // pred_region
        %s224 = ssub.s32 %s16, 1
        // Predicated region
        $region13: #{tpu_custom_call.1} parent=11 // pred_check
          %p225 = pneg %p77
        $region14: #{tpu_custom_call.1} parent=11 // pred_check_branch
          %227 = sbr.rel (%p225) target = $region16
        $region15: #{tpu_custom_call.1} parent=11 // pred_region
          _
        $region16: #{tpu_custom_call.1} parent=11 // pred_fallthru
          _
        // Predicated region
        $region17: #{tpu_custom_call.1} parent=11 // pred_check
          %p228 = pneg %p98
        $region18: #{tpu_custom_call.1} parent=11 // pred_check_branch
          %230 = sbr.rel (%p228) target = $region20
        $region19: #{tpu_custom_call.1} parent=11 // pred_region
          _
        $region20: #{tpu_custom_call.1} parent=11 // pred_fallthru
          _
        // Predicated region
        $region21: #{tpu_custom_call.1} parent=11 // pred_check
          %p231 = pneg %p119
        $region22: #{tpu_custom_call.1} parent=11 // pred_check_branch
          %233 = sbr.rel (%p231) target = $region24
        $region23: #{tpu_custom_call.1} parent=11 // pred_region
          _
        $region24: #{tpu_custom_call.1} parent=11 // pred_fallthru
          _
        // Predicated region
        $region25: #{tpu_custom_call.1} parent=11 // pred_check
          %p234 = pneg %p140
        $region26: #{tpu_custom_call.1} parent=11 // pred_check_branch
          %236 = sbr.rel (%p234) target = $region28
        $region27: #{tpu_custom_call.1} parent=11 // pred_region
          _
        $region28: #{tpu_custom_call.1} parent=11 // pred_fallthru
          _
        // Predicated region
        $region29: #{tpu_custom_call.1} parent=11 // pred_check
          %p237 = pneg %p161
        $region30: #{tpu_custom_call.1} parent=11 // pred_check_branch
          %239 = sbr.rel (%p237) target = $region32
        $region31: #{tpu_custom_call.1} parent=11 // pred_region
          _
        $region32: #{tpu_custom_call.1} parent=11 // pred_fallthru
          _
        // Predicated region
        $region33: #{tpu_custom_call.1} parent=11 // pred_check
          %p240 = pneg %p182
        $region34: #{tpu_custom_call.1} parent=11 // pred_check_branch
          %242 = sbr.rel (%p240) target = $region36
        $region35: #{tpu_custom_call.1} parent=11 // pred_region
          _
        $region36: #{tpu_custom_call.1} parent=11 // pred_fallthru
          _
      $region12: #{tpu_custom_call.1} parent=5 // pred_fallthru
        _
      %p243 = scmp.lt.s32.totalorder %s16, 2
      // Predicated region
      $region37: #{tpu_custom_call.1} parent=5 // pred_check
        %p244 = pneg %p243
      $region38: #{tpu_custom_call.1} parent=5 // pred_check_branch
        %246 = sbr.rel (%p244) target = $region40
      $region39: #{tpu_custom_call.1} parent=5 // pred_region
        // Predicated region
        $region41: #{tpu_custom_call.1} parent=39 // pred_check
          %p247 = pneg %p50
        $region42: #{tpu_custom_call.1} parent=39 // pred_check_branch
          %249 = sbr.rel (%p247) target = $region44
        $region43: #{tpu_custom_call.1} parent=39 // pred_region
          %s250 = smul.u32 25, %s24
          %p251 = scmp.lt.s32.totalorder %s23, 1
          %s252 = scalar_select %p251, %s23, 1
          %p253 = scmp.lt.s32.totalorder %s250, 24
          %s254 = scalar_select %p253, %s250, 24
          %s255 = smul.addr %s252, 25
          %s256 = sadd.s32 %s254, %s255
          %s257 = smul.addr %s256, 4
          %s258 = scalar_lea.vmem %s0, %s257
          %s259 = smul.u32 25, %s24
        $region44: #{tpu_custom_call.1} parent=39 // pred_fallthru
          _
      $region40: #{tpu_custom_call.1} parent=5 // pred_fallthru
        _
      %p260 = scmp.le.s32.totalorder 1, %s16
      %p261 = scmp.lt.s32.totalorder %s16, 3
      %p262 = pnand %p260, %p261
      %p263 = pneg %p262
      // Predicated region
      $region45: #{tpu_custom_call.1} parent=5 // pred_check
        _
      $region46: #{tpu_custom_call.1} parent=5 // pred_check_branch
        %265 = sbr.rel (%p262) target = $region48
      $region47: #{tpu_custom_call.1} parent=5 // pred_region
        %s266 = ssub.s32 %s16, 1
        %s267 = smul.u32 25, %s26
        %p268 = scmp.lt.s32.totalorder %s25, 1
        %s269 = scalar_select %p268, %s25, 1
        %p270 = scmp.lt.s32.totalorder %s267, 24
        %s271 = scalar_select %p270, %s267, 24
        %s272 = smul.addr %s269, 25
        %s273 = sadd.s32 %s271, %s272
        %s274 = smul.addr %s273, 4
        %s275 = scalar_lea.vmem %s0, %s274
        %p276 = pneg %p56
        %p277 = pneg %p53
        %p278 = pneg %p77
        %p279 = pneg %p74
        %p280 = pneg %p98
        %p281 = pneg %p95
        %p282 = pneg %p119
        %p283 = pneg %p116
        %p284 = pneg %p140
        %p285 = pneg %p137
        %p286 = pneg %p161
        %p287 = pneg %p158
        %p288 = pneg %p182
        %p289 = pneg %p179
        %p290 = pneg %p210
        %p291 = pneg %p207
        %s292 = sand.u32 %s197, 1
        %s293 = scalar_lea.sflag [#allocation3], %s292
        %s294 = sand.u32 %s197, 1
        %s295 = smul.addr %s294, 200
        %s296 = scalar_lea.vmem [#allocation2], %s295
        %s297 = smul.u32 25, %s26
        %p298 = scmp.lt.s32.totalorder %s25, 1
        %s299 = scalar_select %p298, %s25, 1
        %p300 = scmp.lt.s32.totalorder %s297, 24
        %s301 = scalar_select %p300, %s297, 24
        %s302 = smul.addr %s299, 25
        %s303 = sadd.s32 %s301, %s302
        %s304 = smul.addr %s303, 4
        %s305 = scalar_lea.vmem %s0, %s304
        %s306 = smul.u32 25, %s26
        %s307 = smul.u32 25, %s26
        %v309 = vld [vmem:[%s305] sm:$0xf]
        %v310 = vld [vmem:[%s305 + $0x4] sm:$0xf]
        %v311 = vld [vmem:[%s305 + $0x8] sm:$0xf]
        %v312 = vld [vmem:[%s305 + $0xc] sm:$0xf]
        %v313 = vld [vmem:[%s305 + $0x10] sm:$0xf]
        %v314 = vld [vmem:[%s305 + $0x14] sm:$0xf]
        %v315 = vld [vmem:[%s305 + $0x18] sm:$0xf]
        %v316 = vld [vmem:[%s305 + $0x1c] sm:$0xf]
        %v317 = vld [vmem:[%s305 + $0x20] sm:$0xf]
        %v318 = vld [vmem:[%s305 + $0x24] sm:$0xf]
        %v319 = vld [vmem:[%s305 + $0x28] sm:$0xf]
        %v320 = vld [vmem:[%s305 + $0x2c] sm:$0xf]
        %v321 = vld [vmem:[%s305 + $0x30] sm:$0xf]
        %v322 = vld [vmem:[%s305 + $0x34] sm:$0xf]
        %v323 = vld [vmem:[%s305 + $0x38] sm:$0xf]
        %v324 = vld [vmem:[%s305 + $0x3c] sm:$0xf]
        %v325 = vld [vmem:[%s305 + $0x40] sm:$0xf]
        %v326 = vld [vmem:[%s305 + $0x44] sm:$0xf]
        %v327 = vld [vmem:[%s305 + $0x48] sm:$0xf]
        %v328 = vld [vmem:[%s305 + $0x4c] sm:$0xf]
        %v329 = vld [vmem:[%s305 + $0x50] sm:$0xf]
        %v330 = vld [vmem:[%s305 + $0x54] sm:$0xf]
        %v331 = vld [vmem:[%s305 + $0x58] sm:$0xf]
        %v332 = vld [vmem:[%s305 + $0x5c] sm:$0xf]
        %v333 = vld [vmem:[%s305 + $0x60] sm:$0xf]
        %v334 = vld [vmem:[%s1] sm:$0xf]
        %v335 = vld [vmem:[%s1 + $0x4] sm:$0xf]
        %v336 = vld [vmem:[%s1 + $0x8] sm:$0xf]
        %v337 = vld [vmem:[%s1 + $0xc] sm:$0xf]
        %v338 = vld [vmem:[%s1 + $0x10] sm:$0xf]
        %v339 = vld [vmem:[%s2] sm:$0x1]
        %v341 = vperm.slane %v339, 0
        %v368 = vunpack.c.l.b16 %v309
        %v369 = vunpack.c.l.b16 %v310
        %v370 = vunpack.c.l.b16 %v311
        %v371 = vunpack.c.l.b16 %v312
        %v372 = vunpack.c.l.b16 %v313
        %v373 = vunpack.c.l.b16 %v314
        %v374 = vunpack.c.l.b16 %v315
        %v375 = vunpack.c.l.b16 %v316
        %v376 = vunpack.c.l.b16 %v317
        %v377 = vunpack.c.l.b16 %v318
        %v378 = vunpack.c.l.b16 %v319
        %v379 = vunpack.c.l.b16 %v320
        %v380 = vunpack.c.l.b16 %v321
        %v381 = vunpack.c.l.b16 %v322
        %v382 = vunpack.c.l.b16 %v323
        %v383 = vunpack.c.l.b16 %v324
        %v384 = vunpack.c.l.b16 %v325
        %v385 = vunpack.c.l.b16 %v326
        %v386 = vunpack.c.l.b16 %v327
        %v387 = vunpack.c.l.b16 %v328
        %v388 = vunpack.c.l.b16 %v329
        %v389 = vunpack.c.l.b16 %v330
        %v390 = vunpack.c.l.b16 %v331
        %v391 = vunpack.c.l.b16 %v332
        %v392 = vunpack.c.l.b16 %v333
        %v393 = vpack.c.b16 %v369, %v368
        %v394 = vpack.c.b16 %v371, %v370
        %v395 = vpack.c.b16 %v373, %v372
        %v396 = vpack.c.b16 %v375, %v374
        %v397 = vpack.c.b16 %v377, %v376
        %v398 = vpack.c.b16 %v379, %v378
        %v399 = vpack.c.b16 %v381, %v380
        %v400 = vpack.c.b16 %v383, %v382
        %v401 = vpack.c.b16 %v385, %v384
        %v402 = vpack.c.b16 %v387, %v386
        %v403 = vpack.c.b16 %v389, %v388
        %v404 = vpack.c.b16 %v391, %v390
        %v405 = vpack.c.b16 %v392, %v392
        %v411 = vunpack.c.l.b16 %v334
        %v412 = vunpack.c.l.b16 %v335
        %v413 = vunpack.c.l.b16 %v336
        %v414 = vunpack.c.l.b16 %v337
        %v415 = vunpack.c.l.b16 %v338
        %v416 = vpack.c.b16 %v412, %v411
        %v417 = vpack.c.b16 %v414, %v413
        %v418 = vpack.c.b16 %v415, %v415
        %vm421 = vcmask 326656
        %v423 = vsel %vm421, %v393, 0
        %v426 = vsel %vm421, %v394, 0
        %v429 = vsel %vm421, %v395, 0
        %v432 = vsel %vm421, %v396, 0
        %v435 = vsel %vm421, %v397, 0
        %v438 = vsel %vm421, %v398, 0
        %v441 = vsel %vm421, %v399, 0
        %v444 = vsel %vm421, %v400, 0
        %v447 = vsel %vm421, %v401, 0
        %v450 = vsel %vm421, %v402, 0
        %v453 = vsel %vm421, %v403, 0
        %v456 = vsel %vm421, %v404, 0
        %v459 = vsel %vm421, %v405, 0
        %vm461 = vcmask 1043456
        %v463 = vsel %vm461, %v418, 0
        %465 = vmatpush.bf16.msra.mxu0 0
        %466 = vmatpush.bf16.msra.mxu0 0
        %467 = vmatpush.bf16.msra.mxu0 0
        %468 = vmatpush.bf16.msra.mxu0 0
        %469 = vmatpush.bf16.msra.mxu0 0
        %470 = vmatpush.bf16.msra.mxu0 %v463
        %471 = vmatpush.bf16.msra.mxu0 %v417
        %472 = vmatpush.bf16.msra.mxu0 %v416
        %473 = vmatmul.bf16.gmra.mxu0 %v423
        %v474 = vpop.f32.mrf.mxu0
        %v475 = vadd.f32 %v341, %v474
        %v476 = vpop.f32.mrf.mxu0
        %v477 = vadd.f32 %v341, %v476
        %478 = vmatmul.bf16.gmra.mxu0 %v426
        %v479 = vpop.f32.mrf.mxu0
        %v480 = vadd.f32 %v341, %v479
        %v481 = vpop.f32.mrf.mxu0
        %v482 = vadd.f32 %v341, %v481
        %483 = vmatmul.bf16.gmra.mxu0 %v429
        %v484 = vpop.f32.mrf.mxu0
        %v485 = vadd.f32 %v341, %v484
        %v486 = vpop.f32.mrf.mxu0
        %v487 = vadd.f32 %v341, %v486
        %488 = vmatmul.bf16.gmra.mxu0 %v432
        %v489 = vpop.f32.mrf.mxu0
        %v490 = vadd.f32 %v341, %v489
        %v491 = vpop.f32.mrf.mxu0
        %v492 = vadd.f32 %v341, %v491
        %493 = vmatmul.bf16.gmra.mxu0 %v435
        %v494 = vpop.f32.mrf.mxu0
        %v495 = vadd.f32 %v341, %v494
        %v496 = vpop.f32.mrf.mxu0
        %v497 = vadd.f32 %v341, %v496
        %498 = vmatmul.bf16.gmra.mxu0 %v438
        %v499 = vpop.f32.mrf.mxu0
        %v500 = vadd.f32 %v341, %v499
        %v501 = vpop.f32.mrf.mxu0
        %v502 = vadd.f32 %v341, %v501
        %503 = vmatmul.bf16.gmra.mxu0 %v441
        %v504 = vpop.f32.mrf.mxu0
        %v505 = vadd.f32 %v341, %v504
        %v506 = vpop.f32.mrf.mxu0
        %v507 = vadd.f32 %v341, %v506
        %508 = vmatmul.bf16.gmra.mxu0 %v444
        %v509 = vpop.f32.mrf.mxu0
        %v510 = vadd.f32 %v341, %v509
        %v511 = vpop.f32.mrf.mxu0
        %v512 = vadd.f32 %v341, %v511
        %513 = vmatmul.bf16.gmra.mxu0 %v447
        %v514 = vpop.f32.mrf.mxu0
        %v515 = vadd.f32 %v341, %v514
        %v516 = vpop.f32.mrf.mxu0
        %v517 = vadd.f32 %v341, %v516
        %518 = vmatmul.bf16.gmra.mxu0 %v450
        %v519 = vpop.f32.mrf.mxu0
        %v520 = vadd.f32 %v341, %v519
        %v521 = vpop.f32.mrf.mxu0
        %v522 = vadd.f32 %v341, %v521
        %523 = vmatmul.bf16.gmra.mxu0 %v453
        %v524 = vpop.f32.mrf.mxu0
        %v525 = vadd.f32 %v341, %v524
        %v526 = vpop.f32.mrf.mxu0
        %v527 = vadd.f32 %v341, %v526
        %528 = vmatmul.bf16.gmra.mxu0 %v456
        %v529 = vpop.f32.mrf.mxu0
        %v530 = vadd.f32 %v341, %v529
        %v531 = vpop.f32.mrf.mxu0
        %v532 = vadd.f32 %v341, %v531
        %533 = vmatmul.bf16.gmra.mxu0 %v459
        %v534 = vpop.f32.mrf.mxu0
        %v535 = vadd.f32 %v341, %v534
        %v536 = vpop.f32.mrf.mxu0
        %537 = vdwg.mxu0
        %v538 = vpack.c.bf16 %v477, %v475
        %v539 = vpack.c.bf16 %v482, %v480
        %v540 = vpack.c.bf16 %v487, %v485
        %v541 = vpack.c.bf16 %v492, %v490
        %v542 = vpack.c.bf16 %v497, %v495
        %v543 = vpack.c.bf16 %v502, %v500
        %v544 = vpack.c.bf16 %v507, %v505
        %v545 = vpack.c.bf16 %v512, %v510
        %v546 = vpack.c.bf16 %v517, %v515
        %v547 = vpack.c.bf16 %v522, %v520
        %v548 = vpack.c.bf16 %v527, %v525
        %v549 = vpack.c.bf16 %v532, %v530
        %v550 = vpack.c.bf16 %v535, %v535
        %v551 = vld [vmem:[%s3] sm:$0xf]
        %v552 = vld [vmem:[%s3 + $0x4] sm:$0xf]
        %v553 = vld [vmem:[%s3 + $0x8] sm:$0xf]
        %v554 = vld [vmem:[%s3 + $0xc] sm:$0xf]
        %v555 = vld [vmem:[%s3 + $0x10] sm:$0xf]
        %v556 = vld [vmem:[%s3 + $0x14] sm:$0xf]
        %v557 = vld [vmem:[%s3 + $0x18] sm:$0xf]
        %v558 = vld [vmem:[%s3 + $0x1c] sm:$0xf]
        %v559 = vld [vmem:[%s4] sm:$0x1]
        %v561 = vperm.slane %v559, 0
        %v571 = vunpack.c.l.b16 %v551
        %v572 = vunpack.c.l.b16 %v552
        %v573 = vunpack.c.l.b16 %v553
        %v574 = vunpack.c.l.b16 %v554
        %v575 = vunpack.c.l.b16 %v555
        %v576 = vunpack.c.l.b16 %v556
        %v577 = vunpack.c.l.b16 %v557
        %v578 = vunpack.c.l.b16 %v558
        %v579 = vpack.c.b16 %v572, %v571
        %v580 = vpack.c.b16 %v574, %v573
        %v581 = vpack.c.b16 %v576, %v575
        %v582 = vpack.c.b16 %v578, %v577
        %vm587 = vcmask 523264
        %v589 = vsel %vm587, %v538, 0
        %v592 = vsel %vm587, %v539, 0
        %v595 = vsel %vm587, %v540, 0
        %v598 = vsel %vm587, %v541, 0
        %v601 = vsel %vm587, %v542, 0
        %v604 = vsel %vm587, %v543, 0
        %v607 = vsel %vm587, %v544, 0
        %v610 = vsel %vm587, %v545, 0
        %v613 = vsel %vm587, %v546, 0
        %v616 = vsel %vm587, %v547, 0
        %v619 = vsel %vm587, %v548, 0
        %v622 = vsel %vm587, %v549, 0
        %v625 = vsel %vm587, %v550, 0
        %627 = vmatpush.bf16.msra.mxu0 0
        %628 = vmatpush.bf16.msra.mxu0 0
        %629 = vmatpush.bf16.msra.mxu0 0
        %630 = vmatpush.bf16.msra.mxu0 0
        %631 = vmatpush.bf16.msra.mxu0 %v582
        %632 = vmatpush.bf16.msra.mxu0 %v581
        %633 = vmatpush.bf16.msra.mxu0 %v580
        %634 = vmatpush.bf16.msra.mxu0 %v579
        %635 = vmatmul.bf16.gmra.mxu0 %v589
        %v636 = vpop.f32.mrf.mxu0
        %v637 = vadd.f32 %v561, %v636
        %v638 = vpop.f32.mrf.mxu0
        %v639 = vadd.f32 %v561, %v638
        %640 = vmatmul.bf16.gmra.mxu0 %v592
        %v641 = vpop.f32.mrf.mxu0
        %v642 = vadd.f32 %v561, %v641
        %v643 = vpop.f32.mrf.mxu0
        %v644 = vadd.f32 %v561, %v643
        %645 = vmatmul.bf16.gmra.mxu0 %v595
        %v646 = vpop.f32.mrf.mxu0
        %v647 = vadd.f32 %v561, %v646
        %v648 = vpop.f32.mrf.mxu0
        %v649 = vadd.f32 %v561, %v648
        %650 = vmatmul.bf16.gmra.mxu0 %v598
        %v651 = vpop.f32.mrf.mxu0
        %v652 = vadd.f32 %v561, %v651
        %v653 = vpop.f32.mrf.mxu0
        %v654 = vadd.f32 %v561, %v653
        %655 = vmatmul.bf16.gmra.mxu0 %v601
        %v656 = vpop.f32.mrf.mxu0
        %v657 = vadd.f32 %v561, %v656
        %v658 = vpop.f32.mrf.mxu0
        %v659 = vadd.f32 %v561, %v658
        %660 = vmatmul.bf16.gmra.mxu0 %v604
        %v661 = vpop.f32.mrf.mxu0
        %v662 = vadd.f32 %v561, %v661
        %v663 = vpop.f32.mrf.mxu0
        %v664 = vadd.f32 %v561, %v663
        %665 = vmatmul.bf16.gmra.mxu0 %v607
        %v666 = vpop.f32.mrf.mxu0
        %v667 = vadd.f32 %v561, %v666
        %v668 = vpop.f32.mrf.mxu0
        %v669 = vadd.f32 %v561, %v668
        %670 = vmatmul.bf16.gmra.mxu0 %v610
        %v671 = vpop.f32.mrf.mxu0
        %v672 = vadd.f32 %v561, %v671
        %v673 = vpop.f32.mrf.mxu0
        %v674 = vadd.f32 %v561, %v673
        %675 = vmatmul.bf16.gmra.mxu0 %v613
        %v676 = vpop.f32.mrf.mxu0
        %v677 = vadd.f32 %v561, %v676
        %v678 = vpop.f32.mrf.mxu0
        %v679 = vadd.f32 %v561, %v678
        %680 = vmatmul.bf16.gmra.mxu0 %v616
        %v681 = vpop.f32.mrf.mxu0
        %v682 = vadd.f32 %v561, %v681
        %v683 = vpop.f32.mrf.mxu0
        %v684 = vadd.f32 %v561, %v683
        %685 = vmatmul.bf16.gmra.mxu0 %v619
        %v686 = vpop.f32.mrf.mxu0
        %v687 = vadd.f32 %v561, %v686
        %v688 = vpop.f32.mrf.mxu0
        %v689 = vadd.f32 %v561, %v688
        %690 = vmatmul.bf16.gmra.mxu0 %v622
        %v691 = vpop.f32.mrf.mxu0
        %v692 = vadd.f32 %v561, %v691
        %v693 = vpop.f32.mrf.mxu0
        %v694 = vadd.f32 %v561, %v693
        %695 = vmatmul.bf16.gmra.mxu0 %v625
        %v696 = vpop.f32.mrf.mxu0
        %v697 = vadd.f32 %v561, %v696
        %v698 = vpop.f32.mrf.mxu0
        %699 = vdwg.mxu0
        %v700 = vxor.u32 %v637, 2147483648
        %v701 = vxor.u32 %v639, 2147483648
        %v702 = vxor.u32 %v642, 2147483648
        %v703 = vxor.u32 %v644, 2147483648
        %v704 = vxor.u32 %v647, 2147483648
        %v705 = vxor.u32 %v649, 2147483648
        %v706 = vxor.u32 %v652, 2147483648
        %v707 = vxor.u32 %v654, 2147483648
        %v708 = vxor.u32 %v657, 2147483648
        %v709 = vxor.u32 %v659, 2147483648
        %v710 = vxor.u32 %v662, 2147483648
        %v711 = vxor.u32 %v664, 2147483648
        %v712 = vxor.u32 %v667, 2147483648
        %v713 = vxor.u32 %v669, 2147483648
        %v714 = vxor.u32 %v672, 2147483648
        %v715 = vxor.u32 %v674, 2147483648
        %v716 = vxor.u32 %v677, 2147483648
        %v717 = vxor.u32 %v679, 2147483648
        %v718 = vxor.u32 %v682, 2147483648
        %v719 = vxor.u32 %v684, 2147483648
        %v720 = vxor.u32 %v687, 2147483648
        %v721 = vxor.u32 %v689, 2147483648
        %v722 = vxor.u32 %v692, 2147483648
        %v723 = vxor.u32 %v694, 2147483648
        %v724 = vxor.u32 %v697, 2147483648
        %v725 = vmul.f32 %v700, 1.442695
        %v726 = vpow.pop %v725
        %v727 = vmul.f32 %v701, 1.442695
        %v728 = vpow.pop %v727
        %v729 = vmul.f32 %v702, 1.442695
        %v730 = vpow.pop %v729
        %v731 = vmul.f32 %v703, 1.442695
        %v732 = vpow.pop %v731
        %v733 = vmul.f32 %v704, 1.442695
        %v734 = vpow.pop %v733
        %v735 = vmul.f32 %v705, 1.442695
        %v736 = vpow.pop %v735
        %v737 = vmul.f32 %v706, 1.442695
        %v738 = vpow.pop %v737
        %v739 = vmul.f32 %v707, 1.442695
        %v740 = vpow.pop %v739
        %v741 = vmul.f32 %v708, 1.442695
        %v742 = vpow.pop %v741
        %v743 = vmul.f32 %v709, 1.442695
        %v744 = vpow.pop %v743
        %v745 = vmul.f32 %v710, 1.442695
        %v746 = vpow.pop %v745
        %v747 = vmul.f32 %v711, 1.442695
        %v748 = vpow.pop %v747
        %v749 = vmul.f32 %v712, 1.442695
        %v750 = vpow.pop %v749
        %v751 = vmul.f32 %v713, 1.442695
        %v752 = vpow.pop %v751
        %v753 = vmul.f32 %v714, 1.442695
        %v754 = vpow.pop %v753
        %v755 = vmul.f32 %v715, 1.442695
        %v756 = vpow.pop %v755
        %v757 = vmul.f32 %v716, 1.442695
        %v758 = vpow.pop %v757
        %v759 = vmul.f32 %v717, 1.442695
        %v760 = vpow.pop %v759
        %v761 = vmul.f32 %v718, 1.442695
        %v762 = vpow.pop %v761
        %v763 = vmul.f32 %v719, 1.442695
        %v764 = vpow.pop %v763
        %v765 = vmul.f32 %v720, 1.442695
        %v766 = vpow.pop %v765
        %v767 = vmul.f32 %v721, 1.442695
        %v768 = vpow.pop %v767
        %v769 = vmul.f32 %v722, 1.442695
        %v770 = vpow.pop %v769
        %v771 = vmul.f32 %v723, 1.442695
        %v772 = vpow.pop %v771
        %v773 = vmul.f32 %v724, 1.442695
        %v774 = vpow.pop %v773
        %v775 = vadd.f32 %v726, 1.0
        %v776 = vadd.f32 %v728, 1.0
        %v777 = vadd.f32 %v730, 1.0
        %v778 = vadd.f32 %v732, 1.0
        %v779 = vadd.f32 %v734, 1.0
        %v780 = vadd.f32 %v736, 1.0
        %v781 = vadd.f32 %v738, 1.0
        %v782 = vadd.f32 %v740, 1.0
        %v783 = vadd.f32 %v742, 1.0
        %v784 = vadd.f32 %v744, 1.0
        %v785 = vadd.f32 %v746, 1.0
        %v786 = vadd.f32 %v748, 1.0
        %v787 = vadd.f32 %v750, 1.0
        %v788 = vadd.f32 %v752, 1.0
        %v789 = vadd.f32 %v754, 1.0
        %v790 = vadd.f32 %v756, 1.0
        %v791 = vadd.f32 %v758, 1.0
        %v792 = vadd.f32 %v760, 1.0
        %v793 = vadd.f32 %v762, 1.0
        %v794 = vadd.f32 %v764, 1.0
        %v795 = vadd.f32 %v766, 1.0
        %v796 = vadd.f32 %v768, 1.0
        %v797 = vadd.f32 %v770, 1.0
        %v798 = vadd.f32 %v772, 1.0
        %v799 = vadd.f32 %v774, 1.0
        %v800 = vrcp.pop %v775
        %v801 = vmul.f32 %v775, %v800
        %v802 = vsub.f32 1.0, %v801
        %v803 = vmul.f32 %v800, %v802
        %v804 = vadd.f32 %v800, %v803
        %vm805 = vweird.f32 %v775
        %vm806 = vweird.f32 %v800
        %vm807 = vmor %vm805, %vm806
        %v808 = vsel %vm807, %v800, %v804
        %v809 = vand.u32 2147483647, %v775
        %vm810 = vcmp.eq.f32.partialorder %v809, 8.507059e+37
        %v811 = vand.u32 %v775, 2147483648
        %v812 = vor.u32 1.1754944e-38, %v811
        %v813 = vsel %vm810, %v812, %v808
        %v814 = vmul.f32 1.0, %v813
        %v815 = vrcp.pop %v776
        %v816 = vmul.f32 %v776, %v815
        %v817 = vsub.f32 1.0, %v816
        %v818 = vmul.f32 %v815, %v817
        %v819 = vadd.f32 %v815, %v818
        %vm820 = vweird.f32 %v776
        %vm821 = vweird.f32 %v815
        %vm822 = vmor %vm820, %vm821
        %v823 = vsel %vm822, %v815, %v819
        %v824 = vand.u32 2147483647, %v776
        %vm825 = vcmp.eq.f32.partialorder %v824, 8.507059e+37
        %v826 = vand.u32 %v776, 2147483648
        %v827 = vor.u32 1.1754944e-38, %v826
        %v828 = vsel %vm825, %v827, %v823
        %v829 = vmul.f32 1.0, %v828
        %v830 = vrcp.pop %v777
        %v831 = vmul.f32 %v777, %v830
        %v832 = vsub.f32 1.0, %v831
        %v833 = vmul.f32 %v830, %v832
        %v834 = vadd.f32 %v830, %v833
        %vm835 = vweird.f32 %v777
        %vm836 = vweird.f32 %v830
        %vm837 = vmor %vm835, %vm836
        %v838 = vsel %vm837, %v830, %v834
        %v839 = vand.u32 2147483647, %v777
        %vm840 = vcmp.eq.f32.partialorder %v839, 8.507059e+37
        %v841 = vand.u32 %v777, 2147483648
        %v842 = vor.u32 1.1754944e-38, %v841
        %v843 = vsel %vm840, %v842, %v838
        %v844 = vmul.f32 1.0, %v843
        %v845 = vrcp.pop %v778
        %v846 = vmul.f32 %v778, %v845
        %v847 = vsub.f32 1.0, %v846
        %v848 = vmul.f32 %v845, %v847
        %v849 = vadd.f32 %v845, %v848
        %vm850 = vweird.f32 %v778
        %vm851 = vweird.f32 %v845
        %vm852 = vmor %vm850, %vm851
        %v853 = vsel %vm852, %v845, %v849
        %v854 = vand.u32 2147483647, %v778
        %vm855 = vcmp.eq.f32.partialorder %v854, 8.507059e+37
        %v856 = vand.u32 %v778, 2147483648
        %v857 = vor.u32 1.1754944e-38, %v856
        %v858 = vsel %vm855, %v857, %v853
        %v859 = vmul.f32 1.0, %v858
        %v860 = vrcp.pop %v779
        %v861 = vmul.f32 %v779, %v860
        %v862 = vsub.f32 1.0, %v861
        %v863 = vmul.f32 %v860, %v862
        %v864 = vadd.f32 %v860, %v863
        %vm865 = vweird.f32 %v779
        %vm866 = vweird.f32 %v860
        %vm867 = vmor %vm865, %vm866
        %v868 = vsel %vm867, %v860, %v864
        %v869 = vand.u32 2147483647, %v779
        %vm870 = vcmp.eq.f32.partialorder %v869, 8.507059e+37
        %v871 = vand.u32 %v779, 2147483648
        %v872 = vor.u32 1.1754944e-38, %v871
        %v873 = vsel %vm870, %v872, %v868
        %v874 = vmul.f32 1.0, %v873
        %v875 = vrcp.pop %v780
        %v876 = vmul.f32 %v780, %v875
        %v877 = vsub.f32 1.0, %v876
        %v878 = vmul.f32 %v875, %v877
        %v879 = vadd.f32 %v875, %v878
        %vm880 = vweird.f32 %v780
        %vm881 = vweird.f32 %v875
        %vm882 = vmor %vm880, %vm881
        %v883 = vsel %vm882, %v875, %v879
        %v884 = vand.u32 2147483647, %v780
        %vm885 = vcmp.eq.f32.partialorder %v884, 8.507059e+37
        %v886 = vand.u32 %v780, 2147483648
        %v887 = vor.u32 1.1754944e-38, %v886
        %v888 = vsel %vm885, %v887, %v883
        %v889 = vmul.f32 1.0, %v888
        %v890 = vrcp.pop %v781
        %v891 = vmul.f32 %v781, %v890
        %v892 = vsub.f32 1.0, %v891
        %v893 = vmul.f32 %v890, %v892
        %v894 = vadd.f32 %v890, %v893
        %vm895 = vweird.f32 %v781
        %vm896 = vweird.f32 %v890
        %vm897 = vmor %vm895, %vm896
        %v898 = vsel %vm897, %v890, %v894
        %v899 = vand.u32 2147483647, %v781
        %vm900 = vcmp.eq.f32.partialorder %v899, 8.507059e+37
        %v901 = vand.u32 %v781, 2147483648
        %v902 = vor.u32 1.1754944e-38, %v901
        %v903 = vsel %vm900, %v902, %v898
        %v904 = vmul.f32 1.0, %v903
        %v905 = vrcp.pop %v782
        %v906 = vmul.f32 %v782, %v905
        %v907 = vsub.f32 1.0, %v906
        %v908 = vmul.f32 %v905, %v907
        %v909 = vadd.f32 %v905, %v908
        %vm910 = vweird.f32 %v782
        %vm911 = vweird.f32 %v905
        %vm912 = vmor %vm910, %vm911
        %v913 = vsel %vm912, %v905, %v909
        %v914 = vand.u32 2147483647, %v782
        %vm915 = vcmp.eq.f32.partialorder %v914, 8.507059e+37
        %v916 = vand.u32 %v782, 2147483648
        %v917 = vor.u32 1.1754944e-38, %v916
        %v918 = vsel %vm915, %v917, %v913
        %v919 = vmul.f32 1.0, %v918
        %v920 = vrcp.pop %v783
        %v921 = vmul.f32 %v783, %v920
        %v922 = vsub.f32 1.0, %v921
        %v923 = vmul.f32 %v920, %v922
        %v924 = vadd.f32 %v920, %v923
        %vm925 = vweird.f32 %v783
        %vm926 = vweird.f32 %v920
        %vm927 = vmor %vm925, %vm926
        %v928 = vsel %vm927, %v920, %v924
        %v929 = vand.u32 2147483647, %v783
        %vm930 = vcmp.eq.f32.partialorder %v929, 8.507059e+37
        %v931 = vand.u32 %v783, 2147483648
        %v932 = vor.u32 1.1754944e-38, %v931
        %v933 = vsel %vm930, %v932, %v928
        %v934 = vmul.f32 1.0, %v933
        %v935 = vrcp.pop %v784
        %v936 = vmul.f32 %v784, %v935
        %v937 = vsub.f32 1.0, %v936
        %v938 = vmul.f32 %v935, %v937
        %v939 = vadd.f32 %v935, %v938
        %vm940 = vweird.f32 %v784
        %vm941 = vweird.f32 %v935
        %vm942 = vmor %vm940, %vm941
        %v943 = vsel %vm942, %v935, %v939
        %v944 = vand.u32 2147483647, %v784
        %vm945 = vcmp.eq.f32.partialorder %v944, 8.507059e+37
        %v946 = vand.u32 %v784, 2147483648
        %v947 = vor.u32 1.1754944e-38, %v946
        %v948 = vsel %vm945, %v947, %v943
        %v949 = vmul.f32 1.0, %v948
        %v950 = vrcp.pop %v785
        %v951 = vmul.f32 %v785, %v950
        %v952 = vsub.f32 1.0, %v951
        %v953 = vmul.f32 %v950, %v952
        %v954 = vadd.f32 %v950, %v953
        %vm955 = vweird.f32 %v785
        %vm956 = vweird.f32 %v950
        %vm957 = vmor %vm955, %vm956
        %v958 = vsel %vm957, %v950, %v954
        %v959 = vand.u32 2147483647, %v785
        %vm960 = vcmp.eq.f32.partialorder %v959, 8.507059e+37
        %v961 = vand.u32 %v785, 2147483648
        %v962 = vor.u32 1.1754944e-38, %v961
        %v963 = vsel %vm960, %v962, %v958
        %v964 = vmul.f32 1.0, %v963
        %v965 = vrcp.pop %v786
        %v966 = vmul.f32 %v786, %v965
        %v967 = vsub.f32 1.0, %v966
        %v968 = vmul.f32 %v965, %v967
        %v969 = vadd.f32 %v965, %v968
        %vm970 = vweird.f32 %v786
        %vm971 = vweird.f32 %v965
        %vm972 = vmor %vm970, %vm971
        %v973 = vsel %vm972, %v965, %v969
        %v974 = vand.u32 2147483647, %v786
        %vm975 = vcmp.eq.f32.partialorder %v974, 8.507059e+37
        %v976 = vand.u32 %v786, 2147483648
        %v977 = vor.u32 1.1754944e-38, %v976
        %v978 = vsel %vm975, %v977, %v973
        %v979 = vmul.f32 1.0, %v978
        %v980 = vrcp.pop %v787
        %v981 = vmul.f32 %v787, %v980
        %v982 = vsub.f32 1.0, %v981
        %v983 = vmul.f32 %v980, %v982
        %v984 = vadd.f32 %v980, %v983
        %vm985 = vweird.f32 %v787
        %vm986 = vweird.f32 %v980
        %vm987 = vmor %vm985, %vm986
        %v988 = vsel %vm987, %v980, %v984
        %v989 = vand.u32 2147483647, %v787
        %vm990 = vcmp.eq.f32.partialorder %v989, 8.507059e+37
        %v991 = vand.u32 %v787, 2147483648
        %v992 = vor.u32 1.1754944e-38, %v991
        %v993 = vsel %vm990, %v992, %v988
        %v994 = vmul.f32 1.0, %v993
        %v995 = vrcp.pop %v788
        %v996 = vmul.f32 %v788, %v995
        %v997 = vsub.f32 1.0, %v996
        %v998 = vmul.f32 %v995, %v997
        %v999 = vadd.f32 %v995, %v998
        %vm1000 = vweird.f32 %v788
        %vm1001 = vweird.f32 %v995
        %vm1002 = vmor %vm1000, %vm1001
        %v1003 = vsel %vm1002, %v995, %v999
        %v1004 = vand.u32 2147483647, %v788
        %vm1005 = vcmp.eq.f32.partialorder %v1004, 8.507059e+37
        %v1006 = vand.u32 %v788, 2147483648
        %v1007 = vor.u32 1.1754944e-38, %v1006
        %v1008 = vsel %vm1005, %v1007, %v1003
        %v1009 = vmul.f32 1.0, %v1008
        %v1010 = vrcp.pop %v789
        %v1011 = vmul.f32 %v789, %v1010
        %v1012 = vsub.f32 1.0, %v1011
        %v1013 = vmul.f32 %v1010, %v1012
        %v1014 = vadd.f32 %v1010, %v1013
        %vm1015 = vweird.f32 %v789
        %vm1016 = vweird.f32 %v1010
        %vm1017 = vmor %vm1015, %vm1016
        %v1018 = vsel %vm1017, %v1010, %v1014
        %v1019 = vand.u32 2147483647, %v789
        %vm1020 = vcmp.eq.f32.partialorder %v1019, 8.507059e+37
        %v1021 = vand.u32 %v789, 2147483648
        %v1022 = vor.u32 1.1754944e-38, %v1021
        %v1023 = vsel %vm1020, %v1022, %v1018
        %v1024 = vmul.f32 1.0, %v1023
        %v1025 = vrcp.pop %v790
        %v1026 = vmul.f32 %v790, %v1025
        %v1027 = vsub.f32 1.0, %v1026
        %v1028 = vmul.f32 %v1025, %v1027
        %v1029 = vadd.f32 %v1025, %v1028
        %vm1030 = vweird.f32 %v790
        %vm1031 = vweird.f32 %v1025
        %vm1032 = vmor %vm1030, %vm1031
        %v1033 = vsel %vm1032, %v1025, %v1029
        %v1034 = vand.u32 2147483647, %v790
        %vm1035 = vcmp.eq.f32.partialorder %v1034, 8.507059e+37
        %v1036 = vand.u32 %v790, 2147483648
        %v1037 = vor.u32 1.1754944e-38, %v1036
        %v1038 = vsel %vm1035, %v1037, %v1033
        %v1039 = vmul.f32 1.0, %v1038
        %v1040 = vrcp.pop %v791
        %v1041 = vmul.f32 %v791, %v1040
        %v1042 = vsub.f32 1.0, %v1041
        %v1043 = vmul.f32 %v1040, %v1042
        %v1044 = vadd.f32 %v1040, %v1043
        %vm1045 = vweird.f32 %v791
        %vm1046 = vweird.f32 %v1040
        %vm1047 = vmor %vm1045, %vm1046
        %v1048 = vsel %vm1047, %v1040, %v1044
        %v1049 = vand.u32 2147483647, %v791
        %vm1050 = vcmp.eq.f32.partialorder %v1049, 8.507059e+37
        %v1051 = vand.u32 %v791, 2147483648
        %v1052 = vor.u32 1.1754944e-38, %v1051
        %v1053 = vsel %vm1050, %v1052, %v1048
        %v1054 = vmul.f32 1.0, %v1053
        %v1055 = vrcp.pop %v792
        %v1056 = vmul.f32 %v792, %v1055
        %v1057 = vsub.f32 1.0, %v1056
        %v1058 = vmul.f32 %v1055, %v1057
        %v1059 = vadd.f32 %v1055, %v1058
        %vm1060 = vweird.f32 %v792
        %vm1061 = vweird.f32 %v1055
        %vm1062 = vmor %vm1060, %vm1061
        %v1063 = vsel %vm1062, %v1055, %v1059
        %v1064 = vand.u32 2147483647, %v792
        %vm1065 = vcmp.eq.f32.partialorder %v1064, 8.507059e+37
        %v1066 = vand.u32 %v792, 2147483648
        %v1067 = vor.u32 1.1754944e-38, %v1066
        %v1068 = vsel %vm1065, %v1067, %v1063
        %v1069 = vmul.f32 1.0, %v1068
        %v1070 = vrcp.pop %v793
        %v1071 = vmul.f32 %v793, %v1070
        %v1072 = vsub.f32 1.0, %v1071
        %v1073 = vmul.f32 %v1070, %v1072
        %v1074 = vadd.f32 %v1070, %v1073
        %vm1075 = vweird.f32 %v793
        %vm1076 = vweird.f32 %v1070
        %vm1077 = vmor %vm1075, %vm1076
        %v1078 = vsel %vm1077, %v1070, %v1074
        %v1079 = vand.u32 2147483647, %v793
        %vm1080 = vcmp.eq.f32.partialorder %v1079, 8.507059e+37
        %v1081 = vand.u32 %v793, 2147483648
        %v1082 = vor.u32 1.1754944e-38, %v1081
        %v1083 = vsel %vm1080, %v1082, %v1078
        %v1084 = vmul.f32 1.0, %v1083
        %v1085 = vrcp.pop %v794
        %v1086 = vmul.f32 %v794, %v1085
        %v1087 = vsub.f32 1.0, %v1086
        %v1088 = vmul.f32 %v1085, %v1087
        %v1089 = vadd.f32 %v1085, %v1088
        %vm1090 = vweird.f32 %v794
        %vm1091 = vweird.f32 %v1085
        %vm1092 = vmor %vm1090, %vm1091
        %v1093 = vsel %vm1092, %v1085, %v1089
        %v1094 = vand.u32 2147483647, %v794
        %vm1095 = vcmp.eq.f32.partialorder %v1094, 8.507059e+37
        %v1096 = vand.u32 %v794, 2147483648
        %v1097 = vor.u32 1.1754944e-38, %v1096
        %v1098 = vsel %vm1095, %v1097, %v1093
        %v1099 = vmul.f32 1.0, %v1098
        %v1100 = vrcp.pop %v795
        %v1101 = vmul.f32 %v795, %v1100
        %v1102 = vsub.f32 1.0, %v1101
        %v1103 = vmul.f32 %v1100, %v1102
        %v1104 = vadd.f32 %v1100, %v1103
        %vm1105 = vweird.f32 %v795
        %vm1106 = vweird.f32 %v1100
        %vm1107 = vmor %vm1105, %vm1106
        %v1108 = vsel %vm1107, %v1100, %v1104
        %v1109 = vand.u32 2147483647, %v795
        %vm1110 = vcmp.eq.f32.partialorder %v1109, 8.507059e+37
        %v1111 = vand.u32 %v795, 2147483648
        %v1112 = vor.u32 1.1754944e-38, %v1111
        %v1113 = vsel %vm1110, %v1112, %v1108
        %v1114 = vmul.f32 1.0, %v1113
        %v1115 = vrcp.pop %v796
        %v1116 = vmul.f32 %v796, %v1115
        %v1117 = vsub.f32 1.0, %v1116
        %v1118 = vmul.f32 %v1115, %v1117
        %v1119 = vadd.f32 %v1115, %v1118
        %vm1120 = vweird.f32 %v796
        %vm1121 = vweird.f32 %v1115
        %vm1122 = vmor %vm1120, %vm1121
        %v1123 = vsel %vm1122, %v1115, %v1119
        %v1124 = vand.u32 2147483647, %v796
        %vm1125 = vcmp.eq.f32.partialorder %v1124, 8.507059e+37
        %v1126 = vand.u32 %v796, 2147483648
        %v1127 = vor.u32 1.1754944e-38, %v1126
        %v1128 = vsel %vm1125, %v1127, %v1123
        %v1129 = vmul.f32 1.0, %v1128
        %v1130 = vrcp.pop %v797
        %v1131 = vmul.f32 %v797, %v1130
        %v1132 = vsub.f32 1.0, %v1131
        %v1133 = vmul.f32 %v1130, %v1132
        %v1134 = vadd.f32 %v1130, %v1133
        %vm1135 = vweird.f32 %v797
        %vm1136 = vweird.f32 %v1130
        %vm1137 = vmor %vm1135, %vm1136
        %v1138 = vsel %vm1137, %v1130, %v1134
        %v1139 = vand.u32 2147483647, %v797
        %vm1140 = vcmp.eq.f32.partialorder %v1139, 8.507059e+37
        %v1141 = vand.u32 %v797, 2147483648
        %v1142 = vor.u32 1.1754944e-38, %v1141
        %v1143 = vsel %vm1140, %v1142, %v1138
        %v1144 = vmul.f32 1.0, %v1143
        %v1145 = vrcp.pop %v798
        %v1146 = vmul.f32 %v798, %v1145
        %v1147 = vsub.f32 1.0, %v1146
        %v1148 = vmul.f32 %v1145, %v1147
        %v1149 = vadd.f32 %v1145, %v1148
        %vm1150 = vweird.f32 %v798
        %vm1151 = vweird.f32 %v1145
        %vm1152 = vmor %vm1150, %vm1151
        %v1153 = vsel %vm1152, %v1145, %v1149
        %v1154 = vand.u32 2147483647, %v798
        %vm1155 = vcmp.eq.f32.partialorder %v1154, 8.507059e+37
        %v1156 = vand.u32 %v798, 2147483648
        %v1157 = vor.u32 1.1754944e-38, %v1156
        %v1158 = vsel %vm1155, %v1157, %v1153
        %v1159 = vmul.f32 1.0, %v1158
        %v1160 = vrcp.pop %v799
        %v1161 = vmul.f32 %v799, %v1160
        %v1162 = vsub.f32 1.0, %v1161
        %v1163 = vmul.f32 %v1160, %v1162
        %v1164 = vadd.f32 %v1160, %v1163
        %vm1165 = vweird.f32 %v799
        %vm1166 = vweird.f32 %v1160
        %vm1167 = vmor %vm1165, %vm1166
        %v1168 = vsel %vm1167, %v1160, %v1164
        %v1169 = vand.u32 2147483647, %v799
        %vm1170 = vcmp.eq.f32.partialorder %v1169, 8.507059e+37
        %v1171 = vand.u32 %v799, 2147483648
        %v1172 = vor.u32 1.1754944e-38, %v1171
        %v1173 = vsel %vm1170, %v1172, %v1168
        %v1174 = vmul.f32 1.0, %v1173
        %v1175 = vmul.f32 %v475, %v814
        %v1176 = vmul.f32 %v477, %v829
        %v1177 = vmul.f32 %v480, %v844
        %v1178 = vmul.f32 %v482, %v859
        %v1179 = vmul.f32 %v485, %v874
        %v1180 = vmul.f32 %v487, %v889
        %v1181 = vmul.f32 %v490, %v904
        %v1182 = vmul.f32 %v492, %v919
        %v1183 = vmul.f32 %v495, %v934
        %v1184 = vmul.f32 %v497, %v949
        %v1185 = vmul.f32 %v500, %v964
        %v1186 = vmul.f32 %v502, %v979
        %v1187 = vmul.f32 %v505, %v994
        %v1188 = vmul.f32 %v507, %v1009
        %v1189 = vmul.f32 %v510, %v1024
        %v1190 = vmul.f32 %v512, %v1039
        %v1191 = vmul.f32 %v515, %v1054
        %v1192 = vmul.f32 %v517, %v1069
        %v1193 = vmul.f32 %v520, %v1084
        %v1194 = vmul.f32 %v522, %v1099
        %v1195 = vmul.f32 %v525, %v1114
        %v1196 = vmul.f32 %v527, %v1129
        %v1197 = vmul.f32 %v530, %v1144
        %v1198 = vmul.f32 %v532, %v1159
        %v1199 = vmul.f32 %v535, %v1174
        %v1200 = vpack.c.bf16 %v1176, %v1175
        %v1201 = vpack.c.bf16 %v1178, %v1177
        %v1202 = vpack.c.bf16 %v1180, %v1179
        %v1203 = vpack.c.bf16 %v1182, %v1181
        %v1204 = vpack.c.bf16 %v1184, %v1183
        %v1205 = vpack.c.bf16 %v1186, %v1185
        %v1206 = vpack.c.bf16 %v1188, %v1187
        %v1207 = vpack.c.bf16 %v1190, %v1189
        %v1208 = vpack.c.bf16 %v1192, %v1191
        %v1209 = vpack.c.bf16 %v1194, %v1193
        %v1210 = vpack.c.bf16 %v1196, %v1195
        %v1211 = vpack.c.bf16 %v1198, %v1197
        %v1212 = vpack.c.bf16 %v1199, %v1199
        %v1213 = vld [vmem:[%s5] sm:$0xf]
        %v1214 = vld [vmem:[%s5 + $0x4] sm:$0xf]
        %v1215 = vld [vmem:[%s5 + $0x8] sm:$0xf]
        %v1216 = vld [vmem:[%s5 + $0xc] sm:$0xf]
        %v1217 = vld [vmem:[%s5 + $0x10] sm:$0xf]
        %v1218 = vld [vmem:[%s5 + $0x14] sm:$0xf]
        %v1219 = vld [vmem:[%s5 + $0x18] sm:$0xf]
        %v1220 = vld [vmem:[%s5 + $0x1c] sm:$0xf]
        %v1221 = vld [vmem:[%s6] sm:$0x1]
        %v1223 = vperm.slane %v1221, 0
        %v1233 = vunpack.c.l.b16 %v1213
        %v1234 = vunpack.c.l.b16 %v1214
        %v1235 = vunpack.c.l.b16 %v1215
        %v1236 = vunpack.c.l.b16 %v1216
        %v1237 = vunpack.c.l.b16 %v1217
        %v1238 = vunpack.c.l.b16 %v1218
        %v1239 = vunpack.c.l.b16 %v1219
        %v1240 = vunpack.c.l.b16 %v1220
        %v1241 = vpack.c.b16 %v1234, %v1233
        %v1242 = vpack.c.b16 %v1236, %v1235
        %v1243 = vpack.c.b16 %v1238, %v1237
        %v1244 = vpack.c.b16 %v1240, %v1239
        %v1250 = vsel %vm587, %v1200, 0
        %v1253 = vsel %vm587, %v1201, 0
        %v1256 = vsel %vm587, %v1202, 0
        %v1259 = vsel %vm587, %v1203, 0
        %v1262 = vsel %vm587, %v1204, 0
        %v1265 = vsel %vm587, %v1205, 0
        %v1268 = vsel %vm587, %v1206, 0
        %v1271 = vsel %vm587, %v1207, 0
        %v1274 = vsel %vm587, %v1208, 0
        %v1277 = vsel %vm587, %v1209, 0
        %v1280 = vsel %vm587, %v1210, 0
        %v1283 = vsel %vm587, %v1211, 0
        %v1286 = vsel %vm587, %v1212, 0
        %1288 = vmatpush.bf16.msra.mxu0 0
        %1289 = vmatpush.bf16.msra.mxu0 0
        %1290 = vmatpush.bf16.msra.mxu0 0
        %1291 = vmatpush.bf16.msra.mxu0 0
        %1292 = vmatpush.bf16.msra.mxu0 %v1244
        %1293 = vmatpush.bf16.msra.mxu0 %v1243
        %1294 = vmatpush.bf16.msra.mxu0 %v1242
        %1295 = vmatpush.bf16.msra.mxu0 %v1241
        %1296 = vmatmul.bf16.gmra.mxu0 %v1250
        %v1297 = vpop.f32.mrf.mxu0
        %v1298 = vadd.f32 %v1223, %v1297
        %v1299 = vpop.f32.mrf.mxu0
        %v1300 = vadd.f32 %v1223, %v1299
        %1301 = vmatmul.bf16.gmra.mxu0 %v1253
        %v1302 = vpop.f32.mrf.mxu0
        %v1303 = vadd.f32 %v1223, %v1302
        %v1304 = vpop.f32.mrf.mxu0
        %v1305 = vadd.f32 %v1223, %v1304
        %1306 = vmatmul.bf16.gmra.mxu0 %v1256
        %v1307 = vpop.f32.mrf.mxu0
        %v1308 = vadd.f32 %v1223, %v1307
        %v1309 = vpop.f32.mrf.mxu0
        %v1310 = vadd.f32 %v1223, %v1309
        %1311 = vmatmul.bf16.gmra.mxu0 %v1259
        %v1312 = vpop.f32.mrf.mxu0
        %v1313 = vadd.f32 %v1223, %v1312
        %v1314 = vpop.f32.mrf.mxu0
        %v1315 = vadd.f32 %v1223, %v1314
        %1316 = vmatmul.bf16.gmra.mxu0 %v1262
        %v1317 = vpop.f32.mrf.mxu0
        %v1318 = vadd.f32 %v1223, %v1317
        %v1319 = vpop.f32.mrf.mxu0
        %v1320 = vadd.f32 %v1223, %v1319
        %1321 = vmatmul.bf16.gmra.mxu0 %v1265
        %v1322 = vpop.f32.mrf.mxu0
        %v1323 = vadd.f32 %v1223, %v1322
        %v1324 = vpop.f32.mrf.mxu0
        %v1325 = vadd.f32 %v1223, %v1324
        %1326 = vmatmul.bf16.gmra.mxu0 %v1268
        %v1327 = vpop.f32.mrf.mxu0
        %v1328 = vadd.f32 %v1223, %v1327
        %v1329 = vpop.f32.mrf.mxu0
        %v1330 = vadd.f32 %v1223, %v1329
        %1331 = vmatmul.bf16.gmra.mxu0 %v1271
        %v1332 = vpop.f32.mrf.mxu0
        %v1333 = vadd.f32 %v1223, %v1332
        %v1334 = vpop.f32.mrf.mxu0
        %v1335 = vadd.f32 %v1223, %v1334
        %1336 = vmatmul.bf16.gmra.mxu0 %v1274
        %v1337 = vpop.f32.mrf.mxu0
        %v1338 = vadd.f32 %v1223, %v1337
        %v1339 = vpop.f32.mrf.mxu0
        %v1340 = vadd.f32 %v1223, %v1339
        %1341 = vmatmul.bf16.gmra.mxu0 %v1277
        %v1342 = vpop.f32.mrf.mxu0
        %v1343 = vadd.f32 %v1223, %v1342
        %v1344 = vpop.f32.mrf.mxu0
        %v1345 = vadd.f32 %v1223, %v1344
        %1346 = vmatmul.bf16.gmra.mxu0 %v1280
        %v1347 = vpop.f32.mrf.mxu0
        %v1348 = vadd.f32 %v1223, %v1347
        %v1349 = vpop.f32.mrf.mxu0
        %v1350 = vadd.f32 %v1223, %v1349
        %1351 = vmatmul.bf16.gmra.mxu0 %v1283
        %v1352 = vpop.f32.mrf.mxu0
        %v1353 = vadd.f32 %v1223, %v1352
        %v1354 = vpop.f32.mrf.mxu0
        %v1355 = vadd.f32 %v1223, %v1354
        %1356 = vmatmul.bf16.gmra.mxu0 %v1286
        %v1357 = vpop.f32.mrf.mxu0
        %v1358 = vadd.f32 %v1223, %v1357
        %v1359 = vpop.f32.mrf.mxu0
        %1360 = vdwg.mxu0
        %1361 = vst [vmem:[%s296] sm:$0xff] %v1298
        %1362 = vst [vmem:[%s296 + $0x8] sm:$0xff] %v1300
        %1363 = vst [vmem:[%s296 + $0x10] sm:$0xff] %v1303
        %1364 = vst [vmem:[%s296 + $0x18] sm:$0xff] %v1305
        %1365 = vst [vmem:[%s296 + $0x20] sm:$0xff] %v1308
        %1366 = vst [vmem:[%s296 + $0x28] sm:$0xff] %v1310
        %1367 = vst [vmem:[%s296 + $0x30] sm:$0xff] %v1313
        %1368 = vst [vmem:[%s296 + $0x38] sm:$0xff] %v1315
        %1369 = vst [vmem:[%s296 + $0x40] sm:$0xff] %v1318
        %1370 = vst [vmem:[%s296 + $0x48] sm:$0xff] %v1320
        %1371 = vst [vmem:[%s296 + $0x50] sm:$0xff] %v1323
        %1372 = vst [vmem:[%s296 + $0x58] sm:$0xff] %v1325
        %1373 = vst [vmem:[%s296 + $0x60] sm:$0xff] %v1328
        %1374 = vst [vmem:[%s296 + $0x68] sm:$0xff] %v1330
        %1375 = vst [vmem:[%s296 + $0x70] sm:$0xff] %v1333
        %1376 = vst [vmem:[%s296 + $0x78] sm:$0xff] %v1335
        %1377 = vst [vmem:[%s296 + $0x80] sm:$0xff] %v1338
        %1378 = vst [vmem:[%s296 + $0x88] sm:$0xff] %v1340
        %1379 = vst [vmem:[%s296 + $0x90] sm:$0xff] %v1343
        %1380 = vst [vmem:[%s296 + $0x98] sm:$0xff] %v1345
        %1381 = vst [vmem:[%s296 + $0xa0] sm:$0xff] %v1348
        %1382 = vst [vmem:[%s296 + $0xa8] sm:$0xff] %v1350
        %1383 = vst [vmem:[%s296 + $0xb0] sm:$0xff] %v1353
        %1384 = vst [vmem:[%s296 + $0xb8] sm:$0xff] %v1355
        %1385 = vst [vmem:[%s296 + $0xc0] sm:$0xff] %v1358
        %s1386 = sand.u32 %s197, 1
        %s1387 = scalar_lea.sflag [#allocation3], %s1386
        %s1388 = sand.u32 %s197, 1
        %s1389 = smul.addr %s1388, 200
        %s1390 = scalar_lea.vmem [#allocation2], %s1389
        // Predicated region
        $region49: #{tpu_custom_call.1} parent=47 // pred_check
          %p1391 = pneg %p207
        $region50: #{tpu_custom_call.1} parent=47 // pred_check_branch
          %1393 = sbr.rel (%p1391) target = $region52
        $region51: #{tpu_custom_call.1} parent=47 // pred_region
          %s1394 = smul.u32 25, %s26
          %1396 = vsyncadd %s1387, 0
          %s1397 = smul.addr %s25, 25
          %s1398 = sadd.s32 %s1394, %s1397
          %s1399 = smul.addr %s1398, 8
          %s1400 = scalar_lea.hbm %s7, %s1399
          %s1401 = sshll.u32 %s1390, 4
          %s1402 = int_to_ptr.vmem [resolvable:$true] %s1401
          %s1403 = sshll.u32 %s1400, 4
          %s1404 = int_to_ptr.hbm [resolvable:$true] %s1403
          %1409 = dma.vmem_to_hbm [thread:$0]  %s1402, 3200, %s1404, %s1387, 128, 128, 8
        $region52: #{tpu_custom_call.1} parent=47 // pred_fallthru
          _
      $region48: #{tpu_custom_call.1} parent=5 // pred_fallthru
        _
      %p1410 = scmp.le.s32.totalorder 2, %s16
      // Predicated region
      $region53: #{tpu_custom_call.1} parent=5 // pred_check
        %p1411 = pneg %p1410
      $region54: #{tpu_custom_call.1} parent=5 // pred_check_branch
        %1413 = sbr.rel (%p1411) target = $region56
      $region55: #{tpu_custom_call.1} parent=5 // pred_region
        %s1414 = ssub.s32 %s16, 2
        // Predicated region
        $region57: #{tpu_custom_call.1} parent=55 // pred_check
          %p1415 = pneg %p213
        $region58: #{tpu_custom_call.1} parent=55 // pred_check_branch
          %1417 = sbr.rel (%p1415) target = $region60
        $region59: #{tpu_custom_call.1} parent=55 // pred_region
          %s1418 = sand.u32 %s198, 1
          %s1419 = scalar_lea.sflag [#allocation3], %s1418
          %s1420 = sand.u32 %s198, 1
          %s1421 = smul.addr %s1420, 200
          %s1422 = scalar_lea.vmem [#allocation2], %s1421
          %1424 = dma.done %s1419, 3200
        $region60: #{tpu_custom_call.1} parent=55 // pred_fallthru
          _
      $region56: #{tpu_custom_call.1} parent=5 // pred_fallthru
        _
    $region6: #{tpu_custom_call.1} parent=1 // loop_footer
      %s20 = sadd.s32 1, %s16
    $region7: #{tpu_custom_call.1} parent=1 // loop_footer_branch
      %15 = sbr.rel target = $region3
    $region8: #{tpu_custom_call.1} parent=1 // loop_exit
      _
    %1425 = vsyncpa [#allocation3], 1
    %s1426 = scalar_lea.sflag [#allocation3], 1
    %1427 = vsyncpa %s1426, 1

</llo_original>
